<compile_context>
chip_gen: v5e
topology: v5e:2x2
jax: 0.10.0
libtpu: 0.0.40
codegen_flags: <defaults>
</compile_context>

<pallas_src>
import jax
import jax.numpy as jnp
from jax.experimental import pallas as pl
from jax.experimental.pallas import tpu as pltpu

BN_EPS = 1e-5  # PyTorch BatchNorm1d default eps
VMEM_BUDGET = 48 * 1024 * 1024  # conservative: fits v7x's 64 MiB/TC with headroom


def _round_up(x, m):
    return ((x + m - 1) // m) * m


def _vmem_footprint(tm_eff, input_dim, n_neurons, use_bf16):
    """Rough VMEM footprint: double-buffered x/out tiles + resident weights +
    a few live activation tiles."""
    wbytes = 2 if use_bf16 else 4
    in_f = input_dim
    weight_bytes = 0
    for out_f in n_neurons:
        weight_bytes += in_f * out_f * wbytes + out_f * 4
        in_f = out_f
    weight_bytes += in_f * 4 + 4                       # head weight row + bias
    x_bytes = tm_eff * input_dim * 4
    act_bytes = tm_eff * max(list(n_neurons) + [1]) * 4
    out_bytes = tm_eff * 4
    return 2 * x_bytes + 2 * out_bytes + 2 * weight_bytes + 3 * act_bytes


def _make_kernel(num_hidden, use_bf16):
    mm_dtype = jnp.bfloat16 if use_bf16 else jnp.float32

    def kernel(x_ref, *refs):
        out_ref = refs[-1]
        prm = refs[:-1]

        h = x_ref[...]                                 # (tm, input_dim) f32

        # Hidden stack: (Linear with folded BatchNorm) -> ReLU, unrolled at
        # trace time.  Matmul in bf16 with f32 accumulation; bias add + ReLU
        # in f32; inter-layer activation stored bf16 (next dot casts anyway).
        for l in range(num_hidden):
            w = prm[2 * l][...]                        # (in_l, out_l) bf16/f32
            b = prm[2 * l + 1][...]                    # (1, out_l)    f32
            h = jnp.dot(h.astype(mm_dtype), w,
                        preferred_element_type=jnp.float32) + b
            h = jnp.maximum(h, 0.0).astype(mm_dtype)   # ReLU, keep bf16

        # Output head (D_last -> 1): VPU multiply + lane reduction instead of
        # a nearly empty MXU matmul with a single output column.
        w_out = prm[2 * num_hidden][...].astype(jnp.float32)   # (1, D_last)
        b_out = prm[2 * num_hidden + 1][...]                   # (1, 1)
        out_ref[...] = (jnp.sum(h.astype(jnp.float32) * w_out,
                                axis=-1, keepdims=True) + b_out)

    return kernel


def regression_nn_forward(x, params, n_neurons, *, tm=4096, use_bf16=True):
    """Fused forward pass of RegressionNN (eval-mode semantics)."""
    N, input_dim = x.shape
    num_hidden = len(n_neurons)

    # Row tile: as large as the batch allows (overhead-bound regime), but
    # capped so the grid has at least 2 steps (v7x: 2 TensorCores/chip can
    # only split a "parallel" axis with >= 2 grid steps).
    tm_cap = max(8, _round_up(pl.cdiv(N, 2), 8))
    tm_eff = max(8, min(tm, tm_cap))

    # Resident-weight VMEM budget guard (matters for wide hidden layers /
    # v7x's halved VMEM): halve the row tile until the footprint fits.
    while tm_eff > 8 and _vmem_footprint(tm_eff, input_dim, n_neurons,
                                         use_bf16) > VMEM_BUDGET:
        tm_eff = max(8, _round_up(tm_eff // 2, 8))
    footprint = _vmem_footprint(tm_eff, input_dim, n_neurons, use_bf16)
    assert footprint <= VMEM_BUDGET, (
        "RegressionNN weights too large for resident-weight strategy; "
        "add a K-tiled grid axis for the largest layer.")
    vmem_limit = int(min(max(2 * footprint, 16 * 1024 * 1024), VMEM_BUDGET))

    # Ragged last block instead of padding x in HBM: rows are independent and
    # out-of-range output rows are never written back, so unspecified data in
    # the partial last input block is harmless.
    grid = (pl.cdiv(N, tm_eff),)

    full = lambda shape: pl.BlockSpec(shape, lambda i: (0,) * len(shape))

    args = [x]
    weight_specs = []
    in_f = input_dim
    for l, out_f in enumerate(n_neurons):
        args += [params[f"w{l}"], params[f"b{l}"]]
        weight_specs += [full((in_f, out_f)), full((1, out_f))]
        in_f = out_f
    args += [params["wout"], params["bout"]]
    weight_specs += [full((1, in_f)), full((1, 1))]

    grid_spec = pltpu.PrefetchScalarGridSpec(
        num_scalar_prefetch=0,
        grid=grid,
        in_specs=[pl.BlockSpec((tm_eff, input_dim), lambda i: (i, 0))] + weight_specs,
        out_specs=pl.BlockSpec((tm_eff, 1), lambda i: (i, 0)),
    )

    out = pl.pallas_call(
        _make_kernel(num_hidden, use_bf16),
        out_shape=jax.ShapeDtypeStruct((N, 1), jnp.float32),
        grid_spec=grid_spec,
        compiler_params=pltpu.CompilerParams(
            dimension_semantics=("parallel",),
            vmem_limit_bytes=vmem_limit,
        ),
    )(*args)
    return out


def init_params(key, input_dim, n_neurons, *, use_bf16=True):
    """Deterministic synthetic PyTorch-layout params with eval-mode BatchNorm
    folded into each hidden Linear; weights laid out (in, out) for the MXU."""
    params = {}
    w_dtype = jnp.bfloat16 if use_bf16 else jnp.float32
    keys = jax.random.split(key, 6 * len(n_neurons) + 2)
    in_f = input_dim
    for l, out_f in enumerate(n_neurons):
        kw, kb, kg, kbe, km, kv = keys[6 * l:6 * l + 6]
        bound = in_f ** -0.5
        w = jax.random.uniform(kw, (out_f, in_f), jnp.float32, -bound, bound)   # torch (out, in)
        b = jax.random.uniform(kb, (out_f,), jnp.float32, -bound, bound)
        gamma = 1.0 + 0.1 * jax.random.normal(kg, (out_f,), jnp.float32)
        beta = 0.1 * jax.random.normal(kbe, (out_f,), jnp.float32)
        r_mean = 0.1 * jax.random.normal(km, (out_f,), jnp.float32)
        r_var = 1.0 + 0.5 * jax.random.uniform(kv, (out_f,), jnp.float32)
        scale = gamma * jax.lax.rsqrt(r_var + BN_EPS)
        w_fold = w.T * scale[None, :]                  # (in, out)
        b_fold = (b - r_mean) * scale + beta           # (out,)
        params[f"w{l}"] = w_fold.astype(w_dtype)
        params[f"b{l}"] = b_fold.reshape(1, -1).astype(jnp.float32)
        in_f = out_f
    kwo, kbo = keys[-2:]
    bound = in_f ** -0.5
    w_out = jax.random.uniform(kwo, (1, in_f), jnp.float32, -bound, bound)      # torch (1, in)
    b_out = jax.random.uniform(kbo, (1,), jnp.float32, -bound, bound)
    params["wout"] = w_out                             # used as a (1, D_last) row
    params["bout"] = b_out.reshape(1, 1)
    return params


def reference_forward(x, params, n_neurons, *, use_bf16=True):
    """Pure-JAX reference mirroring the kernel's dtype behavior."""
    mm_dtype = jnp.bfloat16 if use_bf16 else jnp.float32
    h = x.astype(jnp.float32)
    for l in range(len(n_neurons)):
        h = jnp.dot(h.astype(mm_dtype), params[f"w{l}"],
                    preferred_element_type=jnp.float32) + params[f"b{l}"]
        h = jnp.maximum(h, 0.0).astype(mm_dtype)
    return (jnp.sum(h.astype(jnp.float32) * params["wout"].astype(jnp.float32),
                    axis=-1, keepdims=True) + params["bout"])


if __name__ == "__main__":
    key = jax.random.PRNGKey(0)
    k_x, k_p = jax.random.split(key)

    INPUT_DIM = 32
    N_NEURONS = [64, 128]
    N = 100                      # deliberately not a multiple of the tile (exercises ragged block)

    x = jax.random.normal(k_x, (N, INPUT_DIM), dtype=jnp.float32)
    params = init_params(k_p, INPUT_DIM, N_NEURONS, use_bf16=True)

    out = regression_nn_forward(x, params, N_NEURONS, tm=4096, use_bf16=True)
    jax.block_until_ready(out)

    ref = reference_forward(x, params, N_NEURONS, use_bf16=True)
    err = float(jnp.max(jnp.abs(out - ref)))
    assert out.shape == (N, 1) and out.dtype == jnp.float32
    assert err < 5e-3, f"max abs err vs reference: {err}"
    print("KERNEL_OK")
</pallas_src>

<mosaic_0001>
module attributes {stable_mosaic.version = 11 : i64} {
  func.func @kernel(%arg0: i32, %arg1: memref<56x32xf32, #tpu.memory_space<vmem>>, %arg2: memref<32x64xbf16, #tpu.memory_space<vmem>>, %arg3: memref<1x64xf32, #tpu.memory_space<vmem>>, %arg4: memref<64x128xbf16, #tpu.memory_space<vmem>>, %arg5: memref<1x128xf32, #tpu.memory_space<vmem>>, %arg6: memref<1x128xf32, #tpu.memory_space<vmem>>, %arg7: memref<1x1xf32, #tpu.memory_space<vmem>>, %arg8: memref<56x1xf32, #tpu.memory_space<vmem>>) attributes {dimension_semantics = [#tpu.dimension_semantics<parallel>], iteration_bounds = array<i64: 2>, scalar_prefetch = 0 : i64, scratch_operands = 0 : i64, tpu.core_type = #tpu.core_type<tc>, window_params = [{transform_indices = @transform_0, window_bounds = array<i64: 56, 32>}, {pipeline_mode = #tpu.pipeline_mode<synchronous>, transform_indices = @transform_1, window_bounds = array<i64: 32, 64>}, {pipeline_mode = #tpu.pipeline_mode<synchronous>, transform_indices = @transform_2, window_bounds = array<i64: 1, 64>}, {pipeline_mode = #tpu.pipeline_mode<synchronous>, transform_indices = @transform_3, window_bounds = array<i64: 64, 128>}, {pipeline_mode = #tpu.pipeline_mode<synchronous>, transform_indices = @transform_4, window_bounds = array<i64: 1, 128>}, {pipeline_mode = #tpu.pipeline_mode<synchronous>, transform_indices = @transform_5, window_bounds = array<i64: 1, 128>}, {pipeline_mode = #tpu.pipeline_mode<synchronous>, transform_indices = @transform_6, window_bounds = array<i64: 1, 1>}, {transform_indices = @transform_7, window_bounds = array<i64: 56, 1>}]} {
    %c0 = arith.constant 0 : index
    %c0_0 = arith.constant 0 : index
    %0 = vector.load %arg1[%c0, %c0_0] : memref<56x32xf32, #tpu.memory_space<vmem>>, vector<56x32xf32>
    %c0_1 = arith.constant 0 : index
    %c0_2 = arith.constant 0 : index
    %1 = vector.load %arg2[%c0_1, %c0_2] : memref<32x64xbf16, #tpu.memory_space<vmem>>, vector<32x64xbf16>
    %c0_3 = arith.constant 0 : index
    %c0_4 = arith.constant 0 : index
    %2 = vector.load %arg3[%c0_3, %c0_4] : memref<1x64xf32, #tpu.memory_space<vmem>>, vector<1x64xf32>
    %3 = arith.truncf %0 : vector<56x32xf32> to vector<56x32xbf16>
    %cst = arith.constant dense<0.000000e+00> : vector<56x64xf32>
    %4 = tpu.matmul %3, %1, %cst {dimension_numbers = #tpu.dot_dimension_numbers<[1], [0], [0], [1], [0, 0, 1, 1], [], []>} : vector<56x32xbf16>, vector<32x64xbf16>, vector<56x64xf32> -> vector<56x64xf32>
    %5 = vector.broadcast %2 : vector<1x64xf32> to vector<56x64xf32>
    %6 = arith.addf %4, %5 : vector<56x64xf32>
    %cst_5 = arith.constant 0.000000e+00 : f32
    %7 = vector.broadcast %cst_5 : f32 to vector<56x64xf32>
    %8 = arith.maximumf %6, %7 : vector<56x64xf32>
    %9 = arith.truncf %8 : vector<56x64xf32> to vector<56x64xbf16>
    %c0_6 = arith.constant 0 : index
    %c0_7 = arith.constant 0 : index
    %10 = vector.load %arg4[%c0_6, %c0_7] : memref<64x128xbf16, #tpu.memory_space<vmem>>, vector<64x128xbf16>
    %c0_8 = arith.constant 0 : index
    %c0_9 = arith.constant 0 : index
    %11 = vector.load %arg5[%c0_8, %c0_9] : memref<1x128xf32, #tpu.memory_space<vmem>>, vector<1x128xf32>
    %cst_10 = arith.constant dense<0.000000e+00> : vector<56x128xf32>
    %12 = tpu.matmul %9, %10, %cst_10 {dimension_numbers = #tpu.dot_dimension_numbers<[1], [0], [0], [1], [0, 0, 1, 1], [], []>} : vector<56x64xbf16>, vector<64x128xbf16>, vector<56x128xf32> -> vector<56x128xf32>
    %13 = vector.broadcast %11 : vector<1x128xf32> to vector<56x128xf32>
    %14 = arith.addf %12, %13 : vector<56x128xf32>
    %cst_11 = arith.constant 0.000000e+00 : f32
    %15 = vector.broadcast %cst_11 : f32 to vector<56x128xf32>
    %16 = arith.maximumf %14, %15 : vector<56x128xf32>
    %17 = arith.truncf %16 : vector<56x128xf32> to vector<56x128xbf16>
    %c0_12 = arith.constant 0 : index
    %c0_13 = arith.constant 0 : index
    %18 = vector.load %arg6[%c0_12, %c0_13] : memref<1x128xf32, #tpu.memory_space<vmem>>, vector<1x128xf32>
    %c0_14 = arith.constant 0 : index
    %c0_15 = arith.constant 0 : index
    %19 = vector.load %arg7[%c0_14, %c0_15] : memref<1x1xf32, #tpu.memory_space<vmem>>, vector<1x1xf32>
    %20 = arith.extf %17 : vector<56x128xbf16> to vector<56x128xf32>
    %21 = vector.broadcast %18 : vector<1x128xf32> to vector<56x128xf32>
    %22 = arith.mulf %20, %21 : vector<56x128xf32>
    %cst_16 = arith.constant dense<0.000000e+00> : vector<56xf32>
    %23 = vector.multi_reduction <add>, %22, %cst_16 [1] : vector<56x128xf32> to vector<56xf32>
    %24 = vector.shape_cast %23 : vector<56xf32> to vector<56x1xf32>
    %25 = vector.broadcast %19 : vector<1x1xf32> to vector<56x1xf32>
    %26 = arith.addf %24, %25 : vector<56x1xf32>
    %c0_17 = arith.constant 0 : index
    %c0_18 = arith.constant 0 : index
    %27 = vector.load %arg8[%c0_17, %c0_18] : memref<56x1xf32, #tpu.memory_space<vmem>>, vector<56x1xf32>
    tpu.vector_store %arg8[%c0_17, %c0_18], %26 {strides = array<i32>} : memref<56x1xf32, #tpu.memory_space<vmem>>, vector<56x1xf32>,
    return
  }
  func.func @transform_0(%arg0: i32) -> (i32, i32) {
    %c0_i32 = arith.constant 0 : i32
    %c0_i32_0 = arith.constant 0 : i32
    return %arg0, %c0_i32 : i32, i32
  }
  func.func @transform_1(%arg0: i32) -> (i32, i32) {
    %c0_i32 = arith.constant 0 : i32
    %c0_i32_0 = arith.constant 0 : i32
    %c0_i32_1 = arith.constant 0 : i32
    return %c0_i32, %c0_i32_0 : i32, i32
  }
  func.func @transform_2(%arg0: i32) -> (i32, i32) {
    %c0_i32 = arith.constant 0 : i32
    %c0_i32_0 = arith.constant 0 : i32
    %c0_i32_1 = arith.constant 0 : i32
    return %c0_i32, %c0_i32_0 : i32, i32
  }
  func.func @transform_3(%arg0: i32) -> (i32, i32) {
    %c0_i32 = arith.constant 0 : i32
    %c0_i32_0 = arith.constant 0 : i32
    %c0_i32_1 = arith.constant 0 : i32
    return %c0_i32, %c0_i32_0 : i32, i32
  }
  func.func @transform_4(%arg0: i32) -> (i32, i32) {
    %c0_i32 = arith.constant 0 : i32
    %c0_i32_0 = arith.constant 0 : i32
    %c0_i32_1 = arith.constant 0 : i32
    return %c0_i32, %c0_i32_0 : i32, i32
  }
  func.func @transform_5(%arg0: i32) -> (i32, i32) {
    %c0_i32 = arith.constant 0 : i32
    %c0_i32_0 = arith.constant 0 : i32
    %c0_i32_1 = arith.constant 0 : i32
    return %c0_i32, %c0_i32_0 : i32, i32
  }
  func.func @transform_6(%arg0: i32) -> (i32, i32) {
    %c0_i32 = arith.constant 0 : i32
    %c0_i32_0 = arith.constant 0 : i32
    %c0_i32_1 = arith.constant 0 : i32
    return %c0_i32, %c0_i32_0 : i32, i32
  }
  func.func @transform_7(%arg0: i32) -> (i32, i32) {
    %c0_i32 = arith.constant 0 : i32
    %c0_i32_0 = arith.constant 0 : i32
    return %arg0, %c0_i32 : i32, i32
  }
}

</mosaic_0001>

<llo_original>
// kernel: tpu_custom_call.1
$region0: #{tpu_custom_call.1}
  #allocation0 [shape = 'u32[]', space=smem, size = 0x4, offset = 0x4, fixed_abs, tag = 'smem constant byte address 0x4 - core index']
  #allocation1 [shape = 'u32[72,128]{1,0:T(1,128)}', space=vmem, size = 0x9000, scoped, tag = 'internal scratch']
  #allocation2 [shape = 'f32[1,1]{1,0:T(1,128)S(1)}', space=vmem, size = 0x200, scoped, tag = 'scoped memory for tpu_custom_call.1']
  %s0 = inlined_call_operand.vmem [shape: f32[100,32], index: 0, kind: input, shape index: {}]
  %s1 = inlined_call_operand.vmem [shape: bf16[32,64], index: 1, kind: input, shape index: {}]
  %s2 = inlined_call_operand.vmem [shape: f32[1,64], index: 2, kind: input, shape index: {}]
  %s3 = inlined_call_operand.vmem [shape: bf16[64,128], index: 3, kind: input, shape index: {}]
  %s4 = inlined_call_operand.vmem [shape: f32[1,128], index: 4, kind: input, shape index: {}]
  %s5 = inlined_call_operand.vmem [shape: f32[1,128], index: 5, kind: input, shape index: {}]
  %s6 = inlined_call_operand.<no memory space> [shape: f32[1,1], index: 6, kind: input, shape index: {}]
  %s7 = inlined_call_operand.vmem [shape: f32[100,1], index: 7, kind: output, shape index: {}]
  %s8 = sld [smem:[#allocation0]]
  $region109: #{tpu_custom_call.1} parent=0
    _
  %s10 = ssub.s32 1, %s8
  %s11 = scalar_select 0, %s10, %s8
  %v12 = vstv %s6
  %13 = vst [vmem:[#allocation2] sm:$0x1] %v12
  $region1: #{tpu_custom_call.1} parent=0
    #allocation3 [shape = 'u8[57344]{0}', space=vmem, size = 0xe000, scoped, tag = 'output window, operand 0']
    loop: start=0, step=1, limit=4
    $region2: #{tpu_custom_call.1} parent=1 // loop_pre_header
      _
    $region3: #{tpu_custom_call.1} parent=1 // loop_header
      %s15 = sphi 0, %s19
      %p16 = scmp.ge.s32.totalorder %s15, 4
      %s25 = sphi 0, %s27
      %s28 = sphi 0, %s25
      %s29 = sphi 0, %s28
      %s45 = sphi 0, %s29
      %s49 = sphi 0, %s49
      %s51 = sphi 0, %s49
      %s52 = sphi 0, %s51
      %s66 = sphi 0, %s52
      %s70 = sphi 0, %s70
      %s72 = sphi 0, %s70
      %s73 = sphi 0, %s72
      %s87 = sphi 0, %s73
      %s91 = sphi 0, %s91
      %s93 = sphi 0, %s91
      %s94 = sphi 0, %s93
      %s108 = sphi 0, %s94
      %s112 = sphi 0, %s112
      %s114 = sphi 0, %s112
      %s115 = sphi 0, %s114
      %s129 = sphi 0, %s115
      %s133 = sphi 0, %s133
      %s135 = sphi 0, %s133
      %s136 = sphi 0, %s135
      %s150 = sphi 0, %s136
      %s154 = sphi 0, %s154
      %s156 = sphi 0, %s154
      %s157 = sphi 0, %s156
      %s171 = sphi 0, %s157
      %s177 = sphi 0, %s179
      %s180 = sphi 0, %s177
      %s181 = sphi 0, %s180
      %s197 = sphi 0, %s181
    $region4: #{tpu_custom_call.1} parent=1 // loop_header_branch
      %18 = sbr.rel (%p16) target = $region8
    $region5: #{tpu_custom_call.1} parent=1 // loop_body
      %s20 = ssub.s32 %s15, 1
      %s21 = ssub.s32 %s15, 2
      %s22 = sadd.s32 %s15, 1
      %s23 = ssub.s32 %s15, %s22
      %p24 = scmp.eq.s32.totalorder %s23, 0
      %s26 = sadd.s32 %s25, 1
      %s27 = scalar_select %p24, %s25, %s26
      %p30 = pneg %p24
      %p31 = scmp.eq.s32.totalorder %s15, 1
      %p32 = por %p30, %p31
      %p33 = scmp.ne.s32.totalorder %s25, %s28
      %p34 = scmp.eq.s32.totalorder %s15, 0
      %p35 = por %p33, %p34
      %p36 = scmp.ne.s32.totalorder %s25, %s28
      %p37 = scmp.eq.s32.totalorder %s20, 1
      %p38 = por %p36, %p37
      %p39 = scmp.ne.s32.totalorder %s28, %s29
      %p40 = scmp.eq.s32.totalorder %s20, 0
      %p41 = por %p39, %p40
      %p42 = scmp.ne.s32.totalorder %s28, %s29
      %p43 = scmp.eq.s32.totalorder %s21, 1
      %p44 = por %p42, %p43
      %p46 = scmp.ne.s32.totalorder %s29, %s45
      %p47 = scmp.eq.s32.totalorder %s21, 0
      %p48 = por %p46, %p47
      %s50 = sadd.s32 %s49, 1
      %p53 = scmp.eq.s32.totalorder %s15, 1
      %p54 = scmp.ne.s32.totalorder %s49, %s51
      %p55 = scmp.eq.s32.totalorder %s15, 0
      %p56 = por %p54, %p55
      %p57 = scmp.ne.s32.totalorder %s49, %s51
      %p58 = scmp.eq.s32.totalorder %s20, 1
      %p59 = por %p57, %p58
      %p60 = scmp.ne.s32.totalorder %s51, %s52
      %p61 = scmp.eq.s32.totalorder %s20, 0
      %p62 = por %p60, %p61
      %p63 = scmp.ne.s32.totalorder %s51, %s52
      %p64 = scmp.eq.s32.totalorder %s21, 1
      %p65 = por %p63, %p64
      %p67 = scmp.ne.s32.totalorder %s52, %s66
      %p68 = scmp.eq.s32.totalorder %s21, 0
      %p69 = por %p67, %p68
      %s71 = sadd.s32 %s70, 1
      %p74 = scmp.eq.s32.totalorder %s15, 1
      %p75 = scmp.ne.s32.totalorder %s70, %s72
      %p76 = scmp.eq.s32.totalorder %s15, 0
      %p77 = por %p75, %p76
      %p78 = scmp.ne.s32.totalorder %s70, %s72
      %p79 = scmp.eq.s32.totalorder %s20, 1
      %p80 = por %p78, %p79
      %p81 = scmp.ne.s32.totalorder %s72, %s73
      %p82 = scmp.eq.s32.totalorder %s20, 0
      %p83 = por %p81, %p82
      %p84 = scmp.ne.s32.totalorder %s72, %s73
      %p85 = scmp.eq.s32.totalorder %s21, 1
      %p86 = por %p84, %p85
      %p88 = scmp.ne.s32.totalorder %s73, %s87
      %p89 = scmp.eq.s32.totalorder %s21, 0
      %p90 = por %p88, %p89
      %s92 = sadd.s32 %s91, 1
      %p95 = scmp.eq.s32.totalorder %s15, 1
      %p96 = scmp.ne.s32.totalorder %s91, %s93
      %p97 = scmp.eq.s32.totalorder %s15, 0
      %p98 = por %p96, %p97
      %p99 = scmp.ne.s32.totalorder %s91, %s93
      %p100 = scmp.eq.s32.totalorder %s20, 1
      %p101 = por %p99, %p100
      %p102 = scmp.ne.s32.totalorder %s93, %s94
      %p103 = scmp.eq.s32.totalorder %s20, 0
      %p104 = por %p102, %p103
      %p105 = scmp.ne.s32.totalorder %s93, %s94
      %p106 = scmp.eq.s32.totalorder %s21, 1
      %p107 = por %p105, %p106
      %p109 = scmp.ne.s32.totalorder %s94, %s108
      %p110 = scmp.eq.s32.totalorder %s21, 0
      %p111 = por %p109, %p110
      %s113 = sadd.s32 %s112, 1
      %p116 = scmp.eq.s32.totalorder %s15, 1
      %p117 = scmp.ne.s32.totalorder %s112, %s114
      %p118 = scmp.eq.s32.totalorder %s15, 0
      %p119 = por %p117, %p118
      %p120 = scmp.ne.s32.totalorder %s112, %s114
      %p121 = scmp.eq.s32.totalorder %s20, 1
      %p122 = por %p120, %p121
      %p123 = scmp.ne.s32.totalorder %s114, %s115
      %p124 = scmp.eq.s32.totalorder %s20, 0
      %p125 = por %p123, %p124
      %p126 = scmp.ne.s32.totalorder %s114, %s115
      %p127 = scmp.eq.s32.totalorder %s21, 1
      %p128 = por %p126, %p127
      %p130 = scmp.ne.s32.totalorder %s115, %s129
      %p131 = scmp.eq.s32.totalorder %s21, 0
      %p132 = por %p130, %p131
      %s134 = sadd.s32 %s133, 1
      %p137 = scmp.eq.s32.totalorder %s15, 1
      %p138 = scmp.ne.s32.totalorder %s133, %s135
      %p139 = scmp.eq.s32.totalorder %s15, 0
      %p140 = por %p138, %p139
      %p141 = scmp.ne.s32.totalorder %s133, %s135
      %p142 = scmp.eq.s32.totalorder %s20, 1
      %p143 = por %p141, %p142
      %p144 = scmp.ne.s32.totalorder %s135, %s136
      %p145 = scmp.eq.s32.totalorder %s20, 0
      %p146 = por %p144, %p145
      %p147 = scmp.ne.s32.totalorder %s135, %s136
      %p148 = scmp.eq.s32.totalorder %s21, 1
      %p149 = por %p147, %p148
      %p151 = scmp.ne.s32.totalorder %s136, %s150
      %p152 = scmp.eq.s32.totalorder %s21, 0
      %p153 = por %p151, %p152
      %s155 = sadd.s32 %s154, 1
      %p158 = scmp.eq.s32.totalorder %s15, 1
      %p159 = scmp.ne.s32.totalorder %s154, %s156
      %p160 = scmp.eq.s32.totalorder %s15, 0
      %p161 = por %p159, %p160
      %p162 = scmp.ne.s32.totalorder %s154, %s156
      %p163 = scmp.eq.s32.totalorder %s20, 1
      %p164 = por %p162, %p163
      %p165 = scmp.ne.s32.totalorder %s156, %s157
      %p166 = scmp.eq.s32.totalorder %s20, 0
      %p167 = por %p165, %p166
      %p168 = scmp.ne.s32.totalorder %s156, %s157
      %p169 = scmp.eq.s32.totalorder %s21, 1
      %p170 = por %p168, %p169
      %p172 = scmp.ne.s32.totalorder %s157, %s171
      %p173 = scmp.eq.s32.totalorder %s21, 0
      %p174 = por %p172, %p173
      %s175 = ssub.s32 %s15, %s22
      %p176 = scmp.eq.s32.totalorder %s175, 0
      %s178 = sadd.s32 %s177, 1
      %s179 = scalar_select %p176, %s177, %s178
      %p182 = pneg %p176
      %p183 = scmp.eq.s32.totalorder %s15, 1
      %p184 = por %p182, %p183
      %p185 = scmp.ne.s32.totalorder %s177, %s180
      %p186 = scmp.eq.s32.totalorder %s15, 0
      %p187 = por %p185, %p186
      %p188 = scmp.ne.s32.totalorder %s177, %s180
      %p189 = scmp.eq.s32.totalorder %s20, 1
      %p190 = por %p188, %p189
      %p191 = scmp.ne.s32.totalorder %s180, %s181
      %p192 = scmp.eq.s32.totalorder %s20, 0
      %p193 = por %p191, %p192
      %p194 = scmp.ne.s32.totalorder %s180, %s181
      %p195 = scmp.eq.s32.totalorder %s21, 1
      %p196 = por %p194, %p195
      %p198 = scmp.ne.s32.totalorder %s181, %s197
      %p199 = scmp.eq.s32.totalorder %s21, 0
      %p200 = por %p198, %p199
      %p201 = scmp.le.s32.totalorder 1, %s15
      %p202 = scmp.lt.s32.totalorder %s15, 3
      %p203 = pnand %p201, %p202
      %p204 = pneg %p203
      // Predicated region
      $region9: #{tpu_custom_call.1} parent=5 // pred_check
        _
      $region10: #{tpu_custom_call.1} parent=5 // pred_check_branch
        %206 = sbr.rel (%p203) target = $region12
      $region11: #{tpu_custom_call.1} parent=5 // pred_region
        %s207 = ssub.s32 %s15, 1
        // Predicated region
        $region13: #{tpu_custom_call.1} parent=11 // pred_check
          %p208 = pneg %p62
        $region14: #{tpu_custom_call.1} parent=11 // pred_check_branch
          %210 = sbr.rel (%p208) target = $region16
        $region15: #{tpu_custom_call.1} parent=11 // pred_region
          _
        $region16: #{tpu_custom_call.1} parent=11 // pred_fallthru
          _
        // Predicated region
        $region17: #{tpu_custom_call.1} parent=11 // pred_check
          %p211 = pneg %p83
        $region18: #{tpu_custom_call.1} parent=11 // pred_check_branch
          %213 = sbr.rel (%p211) target = $region20
        $region19: #{tpu_custom_call.1} parent=11 // pred_region
          _
        $region20: #{tpu_custom_call.1} parent=11 // pred_fallthru
          _
        // Predicated region
        $region21: #{tpu_custom_call.1} parent=11 // pred_check
          %p214 = pneg %p104
        $region22: #{tpu_custom_call.1} parent=11 // pred_check_branch
          %216 = sbr.rel (%p214) target = $region24
        $region23: #{tpu_custom_call.1} parent=11 // pred_region
          _
        $region24: #{tpu_custom_call.1} parent=11 // pred_fallthru
          _
        // Predicated region
        $region25: #{tpu_custom_call.1} parent=11 // pred_check
          %p217 = pneg %p125
        $region26: #{tpu_custom_call.1} parent=11 // pred_check_branch
          %219 = sbr.rel (%p217) target = $region28
        $region27: #{tpu_custom_call.1} parent=11 // pred_region
          _
        $region28: #{tpu_custom_call.1} parent=11 // pred_fallthru
          _
        // Predicated region
        $region29: #{tpu_custom_call.1} parent=11 // pred_check
          %p220 = pneg %p146
        $region30: #{tpu_custom_call.1} parent=11 // pred_check_branch
          %222 = sbr.rel (%p220) target = $region32
        $region31: #{tpu_custom_call.1} parent=11 // pred_region
          _
        $region32: #{tpu_custom_call.1} parent=11 // pred_fallthru
          _
        // Predicated region
        $region33: #{tpu_custom_call.1} parent=11 // pred_check
          %p223 = pneg %p167
        $region34: #{tpu_custom_call.1} parent=11 // pred_check_branch
          %225 = sbr.rel (%p223) target = $region36
        $region35: #{tpu_custom_call.1} parent=11 // pred_region
          _
        $region36: #{tpu_custom_call.1} parent=11 // pred_fallthru
          _
      $region12: #{tpu_custom_call.1} parent=5 // pred_fallthru
        _
      %p226 = scmp.lt.s32.totalorder %s15, 2
      // Predicated region
      $region37: #{tpu_custom_call.1} parent=5 // pred_check
        %p227 = pneg %p226
      $region38: #{tpu_custom_call.1} parent=5 // pred_check_branch
        %229 = sbr.rel (%p227) target = $region40
      $region39: #{tpu_custom_call.1} parent=5 // pred_region
        // Predicated region
        $region41: #{tpu_custom_call.1} parent=39 // pred_check
          %p230 = pneg %p35
        $region42: #{tpu_custom_call.1} parent=39 // pred_check_branch
          %232 = sbr.rel (%p230) target = $region44
        $region43: #{tpu_custom_call.1} parent=39 // pred_region
          %s233 = smul.u32 7, %s15
          %s234 = ssub.s32 13, %s233
          %p235 = scmp.lt.s32.totalorder %s234, 7
          %s236 = scalar_select %p235, %s234, 7
          %s237 = smul.u32 8, %s236
          %p238 = scmp.lt.s32.totalorder %s233, 12
          %s239 = scalar_select %p238, %s233, 12
          %s240 = smul.addr %s239, 8
          %s241 = scalar_lea.vmem %s0, %s240
          %s242 = smul.u32 7, %s15
          %s243 = ssub.s32 13, %s242
          %p244 = scmp.lt.s32.totalorder %s243, 7
          %s245 = scalar_select %p244, %s243, 7
          %s246 = smul.u32 8, %s245
        $region44: #{tpu_custom_call.1} parent=39 // pred_fallthru
          _
      $region40: #{tpu_custom_call.1} parent=5 // pred_fallthru
        _
      %p247 = scmp.le.s32.totalorder 1, %s15
      %p248 = scmp.lt.s32.totalorder %s15, 3
      %p249 = pnand %p247, %p248
      %p250 = pneg %p249
      // Predicated region
      $region45: #{tpu_custom_call.1} parent=5 // pred_check
        _
      $region46: #{tpu_custom_call.1} parent=5 // pred_check_branch
        %252 = sbr.rel (%p249) target = $region48
      $region47: #{tpu_custom_call.1} parent=5 // pred_region
        %s253 = ssub.s32 %s15, 1
        %s254 = smul.u32 7, %s20
        %s255 = ssub.s32 13, %s254
        %p256 = scmp.lt.s32.totalorder %s255, 7
        %s257 = scalar_select %p256, %s255, 7
        %s258 = smul.u32 8, %s257
        %p259 = scmp.lt.s32.totalorder %s254, 12
        %s260 = scalar_select %p259, %s254, 12
        %s261 = smul.addr %s260, 8
        %s262 = scalar_lea.vmem %s0, %s261
        %p263 = pneg %p41
        %p264 = pneg %p38
        %p265 = pneg %p62
        %p266 = pneg %p59
        %p267 = pneg %p83
        %p268 = pneg %p80
        %p269 = pneg %p104
        %p270 = pneg %p101
        %p271 = pneg %p125
        %p272 = pneg %p122
        %p273 = pneg %p146
        %p274 = pneg %p143
        %p275 = pneg %p167
        %p276 = pneg %p164
        %p277 = pneg %p193
        %p278 = pneg %p190
        %s279 = sand.u32 %s180, 1
        %s280 = sand.u32 %s180, 1
        %s281 = smul.addr %s280, 56
        %s282 = scalar_lea.vmem [#allocation3], %s281
        %s283 = smul.u32 7, %s20
        %s284 = ssub.s32 13, %s283
        %p285 = scmp.lt.s32.totalorder %s284, 7
        %s286 = scalar_select %p285, %s284, 7
        %s287 = smul.u32 8, %s286
        %p288 = scmp.lt.s32.totalorder %s283, 12
        %s289 = scalar_select %p288, %s283, 12
        %s290 = smul.addr %s289, 8
        %s291 = scalar_lea.vmem %s0, %s290
        %s292 = smul.u32 7, %s20
        %s293 = ssub.s32 13, %s292
        %p294 = scmp.lt.s32.totalorder %s293, 7
        %s295 = scalar_select %p294, %s293, 7
        %s296 = smul.u32 8, %s295
        %s297 = smul.u32 7, %s20
        %s298 = ssub.s32 13, %s297
        %p299 = scmp.lt.s32.totalorder %s298, 7
        %s300 = scalar_select %p299, %s298, 7
        %s301 = smul.u32 8, %s300
        %v303 = vld [vmem:[%s291] sm:$0xff]
        %v304 = vld [vmem:[%s291 + $0x8] sm:$0xff]
        %v305 = vld [vmem:[%s291 + $0x10] sm:$0xff]
        %v306 = vld [vmem:[%s291 + $0x18] sm:$0xff]
        %v307 = vld [vmem:[%s291 + $0x20] sm:$0xff]
        %v308 = vld [vmem:[%s291 + $0x28] sm:$0xff]
        %v309 = vld [vmem:[%s291 + $0x30] sm:$0xff]
        %v310 = vld [vmem:[%s1] sm:$0xf]
        %v311 = vld [vmem:[%s1 + $0x4] sm:$0xf]
        %v312 = vld [vmem:[%s1 + $0x8] sm:$0xf]
        %v313 = vld [vmem:[%s1 + $0xc] sm:$0xf]
        %v314 = vld [vmem:[%s2] sm:$0x1]
        %v315 = vpack.c.bf16 %v304, %v303
        %v316 = vpack.c.bf16 %v306, %v305
        %v317 = vpack.c.bf16 %v308, %v307
        %v318 = vpack.c.bf16 %v309, %v309
        %v320 = vperm.slane %v314, 0
        %v326 = vunpack.c.l.b16 %v310
        %v327 = vunpack.c.l.b16 %v311
        %v328 = vunpack.c.l.b16 %v312
        %v329 = vunpack.c.l.b16 %v313
        %v330 = vpack.c.b16 %v327, %v326
        %v331 = vpack.c.b16 %v329, %v328
        %vm334 = vcmask 261120
        %v336 = vsel %vm334, %v315, 0
        %v339 = vsel %vm334, %v316, 0
        %v342 = vsel %vm334, %v317, 0
        %v345 = vsel %vm334, %v318, 0
        %347 = vmatpush.bf16.msra.mxu0 0
        %348 = vmatpush.bf16.msra.mxu0 0
        %349 = vmatpush.bf16.msra.mxu0 0
        %350 = vmatpush.bf16.msra.mxu0 0
        %351 = vmatpush.bf16.msra.mxu0 0
        %352 = vmatpush.bf16.msra.mxu0 0
        %353 = vmatpush.bf16.msra.mxu0 %v331
        %354 = vmatpush.bf16.msra.mxu0 %v330
        %355 = vmatmul.bf16.gmra.mxu0 %v336
        %v356 = vpop.f32.mrf.mxu0
        %v357 = vadd.f32 %v320, %v356
        %v358 = vpop.f32.mrf.mxu0
        %v359 = vadd.f32 %v320, %v358
        %360 = vmatmul.bf16.gmra.mxu0 %v339
        %v361 = vpop.f32.mrf.mxu0
        %v362 = vadd.f32 %v320, %v361
        %v363 = vpop.f32.mrf.mxu0
        %v364 = vadd.f32 %v320, %v363
        %365 = vmatmul.bf16.gmra.mxu0 %v342
        %v366 = vpop.f32.mrf.mxu0
        %v367 = vadd.f32 %v320, %v366
        %v368 = vpop.f32.mrf.mxu0
        %v369 = vadd.f32 %v320, %v368
        %370 = vmatmul.bf16.gmra.mxu0 %v345
        %v371 = vpop.f32.mrf.mxu0
        %v372 = vadd.f32 %v320, %v371
        %v373 = vpop.f32.mrf.mxu0
        %374 = vdwg.mxu0
        %v375 = vmax.f32 %v357, 0.0
        %v376 = vmax.f32 %v359, 0.0
        %v377 = vmax.f32 %v362, 0.0
        %v378 = vmax.f32 %v364, 0.0
        %v379 = vmax.f32 %v367, 0.0
        %v380 = vmax.f32 %v369, 0.0
        %v381 = vmax.f32 %v372, 0.0
        %v382 = vpack.c.bf16 %v376, %v375
        %v383 = vpack.c.bf16 %v378, %v377
        %v384 = vpack.c.bf16 %v380, %v379
        %v385 = vpack.c.bf16 %v381, %v381
        %v386 = vld [vmem:[%s3] sm:$0xf]
        %v387 = vld [vmem:[%s3 + $0x4] sm:$0xf]
        %v388 = vld [vmem:[%s3 + $0x8] sm:$0xf]
        %v389 = vld [vmem:[%s3 + $0xc] sm:$0xf]
        %v390 = vld [vmem:[%s3 + $0x10] sm:$0xf]
        %v391 = vld [vmem:[%s3 + $0x14] sm:$0xf]
        %v392 = vld [vmem:[%s3 + $0x18] sm:$0xf]
        %v393 = vld [vmem:[%s3 + $0x1c] sm:$0xf]
        %v394 = vld [vmem:[%s4] sm:$0x1]
        %v396 = vperm.slane %v394, 0
        %v406 = vunpack.c.l.b16 %v386
        %v407 = vunpack.c.l.b16 %v387
        %v408 = vunpack.c.l.b16 %v388
        %v409 = vunpack.c.l.b16 %v389
        %v410 = vunpack.c.l.b16 %v390
        %v411 = vunpack.c.l.b16 %v391
        %v412 = vunpack.c.l.b16 %v392
        %v413 = vunpack.c.l.b16 %v393
        %v414 = vpack.c.b16 %v407, %v406
        %v415 = vpack.c.b16 %v409, %v408
        %v416 = vpack.c.b16 %v411, %v410
        %v417 = vpack.c.b16 %v413, %v412
        %vm422 = vcmask 523264
        %v424 = vsel %vm422, %v382, 0
        %v427 = vsel %vm422, %v383, 0
        %v430 = vsel %vm422, %v384, 0
        %v433 = vsel %vm422, %v385, 0
        %435 = vmatpush.bf16.msra.mxu0 0
        %436 = vmatpush.bf16.msra.mxu0 0
        %437 = vmatpush.bf16.msra.mxu0 0
        %438 = vmatpush.bf16.msra.mxu0 0
        %439 = vmatpush.bf16.msra.mxu0 %v417
        %440 = vmatpush.bf16.msra.mxu0 %v416
        %441 = vmatpush.bf16.msra.mxu0 %v415
        %442 = vmatpush.bf16.msra.mxu0 %v414
        %443 = vmatmul.bf16.gmra.mxu0 %v424
        %v444 = vpop.f32.mrf.mxu0
        %v445 = vadd.f32 %v396, %v444
        %v446 = vpop.f32.mrf.mxu0
        %v447 = vadd.f32 %v396, %v446
        %448 = vmatmul.bf16.gmra.mxu0 %v427
        %v449 = vpop.f32.mrf.mxu0
        %v450 = vadd.f32 %v396, %v449
        %v451 = vpop.f32.mrf.mxu0
        %v452 = vadd.f32 %v396, %v451
        %453 = vmatmul.bf16.gmra.mxu0 %v430
        %v454 = vpop.f32.mrf.mxu0
        %v455 = vadd.f32 %v396, %v454
        %v456 = vpop.f32.mrf.mxu0
        %v457 = vadd.f32 %v396, %v456
        %458 = vmatmul.bf16.gmra.mxu0 %v433
        %v459 = vpop.f32.mrf.mxu0
        %v460 = vadd.f32 %v396, %v459
        %v461 = vpop.f32.mrf.mxu0
        %462 = vdwg.mxu0
        %v463 = vmax.f32 %v445, 0.0
        %v464 = vmax.f32 %v447, 0.0
        %v465 = vmax.f32 %v450, 0.0
        %v466 = vmax.f32 %v452, 0.0
        %v467 = vmax.f32 %v455, 0.0
        %v468 = vmax.f32 %v457, 0.0
        %v469 = vmax.f32 %v460, 0.0
        %v470 = vpack.c.bf16 %v463, %v463
        %v471 = vpack.c.bf16 %v464, %v464
        %v472 = vpack.c.bf16 %v465, %v465
        %v473 = vpack.c.bf16 %v466, %v466
        %v474 = vpack.c.bf16 %v467, %v467
        %v475 = vpack.c.bf16 %v468, %v468
        %v476 = vpack.c.bf16 %v469, %v469
        %v477 = vld [vmem:[%s5] sm:$0x1]
        %v478 = vld [vmem:[#allocation2] sm:$0x1]
        %v479 = vunpack.c.l.bf16 %v470
        %v480 = vunpack.c.l.bf16 %v471
        %v481 = vunpack.c.l.bf16 %v472
        %v482 = vunpack.c.l.bf16 %v473
        %v483 = vunpack.c.l.bf16 %v474
        %v484 = vunpack.c.l.bf16 %v475
        %v485 = vunpack.c.l.bf16 %v476
        %v487 = vperm.slane %v477, 0
        %v489 = vmul.f32 %v479, %v487
        %v490 = vmul.f32 %v480, %v487
        %v491 = vmul.f32 %v481, %v487
        %v492 = vmul.f32 %v482, %v487
        %v493 = vmul.f32 %v483, %v487
        %v494 = vmul.f32 %v484, %v487
        %v495 = vmul.f32 %v485, %v487
        %496 = vadd.xlane.f32.xlu0 %v489
        %v497 = vpop.xlane.xlu0 %496
        %498 = vadd.xlane.f32.xlu0 %v490
        %v499 = vpop.xlane.xlu0 %498
        %500 = vadd.xlane.f32.xlu0 %v491
        %v501 = vpop.xlane.xlu0 %500
        %502 = vadd.xlane.f32.xlu0 %v492
        %v503 = vpop.xlane.xlu0 %502
        %504 = vadd.xlane.f32.xlu0 %v493
        %v505 = vpop.xlane.xlu0 %504
        %506 = vadd.xlane.f32.xlu0 %v494
        %v507 = vpop.xlane.xlu0 %506
        %508 = vadd.xlane.f32.xlu0 %v495
        %v509 = vpop.xlane.xlu0 %508
        %v511 = vperm.slane %v478, 0
        %v513 = vadd.f32 %v497, %v511
        %v514 = vadd.f32 %v499, %v511
        %v515 = vadd.f32 %v501, %v511
        %v516 = vadd.f32 %v503, %v511
        %v517 = vadd.f32 %v505, %v511
        %v518 = vadd.f32 %v507, %v511
        %v519 = vadd.f32 %v509, %v511
        %vm520 = vcmask 7168
        %521 = vst.msk [vmem:[%s282] sm:$0xff] %vm520, %v513
        %522 = vst.msk [vmem:[%s282 + $0x8] sm:$0xff] %vm520, %v514
        %523 = vst.msk [vmem:[%s282 + $0x10] sm:$0xff] %vm520, %v515
        %524 = vst.msk [vmem:[%s282 + $0x18] sm:$0xff] %vm520, %v516
        %525 = vst.msk [vmem:[%s282 + $0x20] sm:$0xff] %vm520, %v517
        %526 = vst.msk [vmem:[%s282 + $0x28] sm:$0xff] %vm520, %v518
        %527 = vst.msk [vmem:[%s282 + $0x30] sm:$0xff] %vm520, %v519
        %s528 = sand.u32 %s180, 1
        %s529 = sand.u32 %s180, 1
        %s530 = smul.addr %s529, 56
        %s531 = scalar_lea.vmem [#allocation3], %s530
        // Predicated region
        $region49: #{tpu_custom_call.1} parent=47 // pred_check
          %p532 = pneg %p190
        $region50: #{tpu_custom_call.1} parent=47 // pred_check_branch
          %534 = sbr.rel (%p532) target = $region52
        $region51: #{tpu_custom_call.1} parent=47 // pred_region
          %s535 = smul.u32 7, %s20
          %s536 = ssub.s32 13, %s535
          %p537 = scmp.lt.s32.totalorder %s536, 7
          %s538 = scalar_select %p537, %s536, 7
          %s539 = smul.u32 8, %s538
          %p540 = scmp.ne.s32.totalorder 0, %s539
          %s541 = smul.addr %s535, 8
          %s542 = scalar_lea.vmem %s7, %s541
          // Predicated region
          $region53: #{tpu_custom_call.1} parent=51 // pred_check
            %p543 = pneg %p540
          $region54: #{tpu_custom_call.1} parent=51 // pred_check_branch
            %545 = sbr.rel (%p543) target = $region56
          $region55: #{tpu_custom_call.1} parent=51 // pred_region
            // Predicated region
            $region57: #{tpu_custom_call.1} parent=55 // pred_check
              _
            $region58: #{tpu_custom_call.1} parent=55 // pred_check_branch
              %547 = sbr.rel (0) target = $region60
            $region59: #{tpu_custom_call.1} parent=55 // pred_region
              // Predicated region
              $region79: #{tpu_custom_call.1} parent=59 // pred_check
                _
              $region80: #{tpu_custom_call.1} parent=59 // pred_check_branch
                %610 = sbr.rel (0) target = $region82
              $region81: #{tpu_custom_call.1} parent=59 // pred_region
                %s611 = sdiv.u32.pop %s538, 7
                %s612 = srem.u32.pop %s538, 7
                // While loop
                $region83: #{tpu_custom_call.1} parent=81 // loop_pre_header
                  _
                $region84: #{tpu_custom_call.1} parent=81 // loop_header
                  %s614 = sphi 0, %s616
                  %p615 = scmp.ge.s32.totalorder %s614, %s611
                  %s619 = sphi 0, %s638
                  %s620 = sphi %s531, %s641
                  %s621 = sphi %s542, %s642
                $region85: #{tpu_custom_call.1} parent=81 // loop_header_branch
                  %618 = sbr.rel (%p615) target = $region89
                $region86: #{tpu_custom_call.1} parent=81 // loop_body
                  %v622 = vld [vmem:[%s620] sm:$0xff]
                  %623 = vst [vmem:[%s621] sm:$0xff] %v622
                  %v624 = vld [vmem:[%s620 + $0x8] sm:$0xff]
                  %625 = vst [vmem:[%s621 + $0x8] sm:$0xff] %v624
                  %v626 = vld [vmem:[%s620 + $0x10] sm:$0xff]
                  %627 = vst [vmem:[%s621 + $0x10] sm:$0xff] %v626
                  %v628 = vld [vmem:[%s620 + $0x18] sm:$0xff]
                  %629 = vst [vmem:[%s621 + $0x18] sm:$0xff] %v628
                  %v630 = vld [vmem:[%s620 + $0x20] sm:$0xff]
                  %631 = vst [vmem:[%s621 + $0x20] sm:$0xff] %v630
                  %v632 = vld [vmem:[%s620 + $0x28] sm:$0xff]
                  %633 = vst [vmem:[%s621 + $0x28] sm:$0xff] %v632
                  %v634 = vld [vmem:[%s620 + $0x30] sm:$0xff]
                  %635 = vst [vmem:[%s621 + $0x30] sm:$0xff] %v634
                  %s636 = sadd.s32 1, %s619
                  %p637 = scmp.ge.s32.totalorder %s636, %s611
                  %s638 = scalar_select %p637, 0, %s636
                  %s639 = smul.u32 %s638, 56
                  %s640 = smul.u32 %s638, 56
                  %s641 = scalar_lea.vmem %s531, %s639 [#allocation3]
                  %s642 = scalar_lea.vmem %s542, %s640
                $region87: #{tpu_custom_call.1} parent=81 // loop_footer
                  %s616 = sadd.s32 %s614, 1
                $region88: #{tpu_custom_call.1} parent=81 // loop_footer_branch
                  %613 = sbr.rel target = $region84
                $region89: #{tpu_custom_call.1} parent=81 // loop_exit
                  _
                %s643 = sdiv.u32.pop %s538, 7
                %s644 = srem.u32.pop %s538, 7
                %s645 = smul.u32 %s643, 7
                %s646 = smul.u32 8, %s645
                %s647 = scalar_lea.vmem %s531, %s646 [#allocation3]
                %s648 = smul.u32 8, %s645
                %s649 = scalar_lea.vmem %s542, %s648
                // While loop
                $region90: #{tpu_custom_call.1} parent=81 // loop_pre_header
                  _
                $region91: #{tpu_custom_call.1} parent=81 // loop_header
                  %s651 = sphi 0, %s653
                  %p652 = scmp.ge.s32.totalorder %s651, %s644
                  %s656 = sphi 0, %s663
                  %s657 = sphi %s647, %s666
                  %s658 = sphi %s649, %s667
                $region92: #{tpu_custom_call.1} parent=81 // loop_header_branch
                  %655 = sbr.rel (%p652) target = $region96
                $region93: #{tpu_custom_call.1} parent=81 // loop_body
                  %v659 = vld [vmem:[%s657] sm:$0xff]
                  %660 = vst [vmem:[%s658] sm:$0xff] %v659
                  %s661 = sadd.s32 1, %s656
                  %p662 = scmp.ge.s32.totalorder %s661, %s644
                  %s663 = scalar_select %p662, 0, %s661
                  %s664 = smul.u32 %s663, 8
                  %s665 = smul.u32 %s663, 8
                  %s666 = scalar_lea.vmem %s647, %s664 [#allocation3]
                  %s667 = scalar_lea.vmem %s649, %s665
                $region94: #{tpu_custom_call.1} parent=81 // loop_footer
                  %s653 = sadd.s32 %s651, 1
                $region95: #{tpu_custom_call.1} parent=81 // loop_footer_branch
                  %650 = sbr.rel target = $region91
                $region96: #{tpu_custom_call.1} parent=81 // loop_exit
                  _
              $region82: #{tpu_custom_call.1} parent=59 // pred_fallthru
                _
              // Predicated region
              $region97: #{tpu_custom_call.1} parent=59 // pred_check
                _
              $region98: #{tpu_custom_call.1} parent=59 // pred_check_branch
                %669 = sbr.rel target = $region100
              $region99: #{tpu_custom_call.1} parent=59 // pred_region
                _
              $region100: #{tpu_custom_call.1} parent=59 // pred_fallthru
                _
            $region60: #{tpu_custom_call.1} parent=55 // pred_fallthru
              _
            // Predicated region
            $region61: #{tpu_custom_call.1} parent=55 // pred_check
              _
            $region62: #{tpu_custom_call.1} parent=55 // pred_check_branch
              %549 = sbr.rel target = $region64
            $region63: #{tpu_custom_call.1} parent=55 // pred_region
              %s551 = ssub.s32 256, 1
              %s552 = sdiv.u32.pop %s538, 7
              %s553 = srem.u32.pop %s538, 7
              // While loop
              $region65: #{tpu_custom_call.1} parent=63 // loop_pre_header
                _
              $region66: #{tpu_custom_call.1} parent=63 // loop_header
                %s555 = sphi 0, %s557
                %p556 = scmp.ge.s32.totalorder %s555, %s552
                %s560 = sphi 0, %s579
                %s561 = sphi %s531, %s582
                %s562 = sphi %s542, %s583
              $region67: #{tpu_custom_call.1} parent=63 // loop_header_branch
                %559 = sbr.rel (%p556) target = $region71
              $region68: #{tpu_custom_call.1} parent=63 // loop_body
                %v563 = vld [vmem:[%s561] sm:%s551]
                %564 = vst [vmem:[%s562] sm:%s551] %v563
                %v565 = vld [vmem:[%s561 + $0x8] sm:%s551]
                %566 = vst [vmem:[%s562 + $0x8] sm:%s551] %v565
                %v567 = vld [vmem:[%s561 + $0x10] sm:%s551]
                %568 = vst [vmem:[%s562 + $0x10] sm:%s551] %v567
                %v569 = vld [vmem:[%s561 + $0x18] sm:%s551]
                %570 = vst [vmem:[%s562 + $0x18] sm:%s551] %v569
                %v571 = vld [vmem:[%s561 + $0x20] sm:%s551]
                %572 = vst [vmem:[%s562 + $0x20] sm:%s551] %v571
                %v573 = vld [vmem:[%s561 + $0x28] sm:%s551]
                %574 = vst [vmem:[%s562 + $0x28] sm:%s551] %v573
                %v575 = vld [vmem:[%s561 + $0x30] sm:%s551]
                %576 = vst [vmem:[%s562 + $0x30] sm:%s551] %v575
                %s577 = sadd.s32 1, %s560
                %p578 = scmp.ge.s32.totalorder %s577, %s552
                %s579 = scalar_select %p578, 0, %s577
                %s580 = smul.u32 %s579, 56
                %s581 = smul.u32 %s579, 56
                %s582 = scalar_lea.vmem %s531, %s580 [#allocation3]
                %s583 = scalar_lea.vmem %s542, %s581
              $region69: #{tpu_custom_call.1} parent=63 // loop_footer
                %s557 = sadd.s32 %s555, 1
              $region70: #{tpu_custom_call.1} parent=63 // loop_footer_branch
                %554 = sbr.rel target = $region66
              $region71: #{tpu_custom_call.1} parent=63 // loop_exit
                _
              %s584 = sdiv.u32.pop %s538, 7
              %s585 = srem.u32.pop %s538, 7
              %s586 = smul.u32 %s584, 7
              %s587 = smul.u32 8, %s586
              %s588 = scalar_lea.vmem %s531, %s587 [#allocation3]
              %s589 = smul.u32 8, %s586
              %s590 = scalar_lea.vmem %s542, %s589
              // While loop
              $region72: #{tpu_custom_call.1} parent=63 // loop_pre_header
                _
              $region73: #{tpu_custom_call.1} parent=63 // loop_header
                %s592 = sphi 0, %s594
                %p593 = scmp.ge.s32.totalorder %s592, %s585
                %s597 = sphi 0, %s604
                %s598 = sphi %s588, %s607
                %s599 = sphi %s590, %s608
              $region74: #{tpu_custom_call.1} parent=63 // loop_header_branch
                %596 = sbr.rel (%p593) target = $region78
              $region75: #{tpu_custom_call.1} parent=63 // loop_body
                %v600 = vld [vmem:[%s598] sm:%s551]
                %601 = vst [vmem:[%s599] sm:%s551] %v600
                %s602 = sadd.s32 1, %s597
                %p603 = scmp.ge.s32.totalorder %s602, %s585
                %s604 = scalar_select %p603, 0, %s602
                %s605 = smul.u32 %s604, 8
                %s606 = smul.u32 %s604, 8
                %s607 = scalar_lea.vmem %s588, %s605 [#allocation3]
                %s608 = scalar_lea.vmem %s590, %s606
              $region76: #{tpu_custom_call.1} parent=63 // loop_footer
                %s594 = sadd.s32 %s592, 1
              $region77: #{tpu_custom_call.1} parent=63 // loop_footer_branch
                %591 = sbr.rel target = $region73
              $region78: #{tpu_custom_call.1} parent=63 // loop_exit
                _
            $region64: #{tpu_custom_call.1} parent=55 // pred_fallthru
              _
          $region56: #{tpu_custom_call.1} parent=51 // pred_fallthru
            _
          %670 = vnop
        $region52: #{tpu_custom_call.1} parent=47 // pred_fallthru
          _
      $region48: #{tpu_custom_call.1} parent=5 // pred_fallthru
        _
      %p671 = scmp.le.s32.totalorder 2, %s15
      // Predicated region
      $region101: #{tpu_custom_call.1} parent=5 // pred_check
        %p672 = pneg %p671
      $region102: #{tpu_custom_call.1} parent=5 // pred_check_branch
        %674 = sbr.rel (%p672) target = $region104
      $region103: #{tpu_custom_call.1} parent=5 // pred_region
        %s675 = ssub.s32 %s15, 2
        // Predicated region
        $region105: #{tpu_custom_call.1} parent=103 // pred_check
          %p676 = pneg %p196
        $region106: #{tpu_custom_call.1} parent=103 // pred_check_branch
          %678 = sbr.rel (%p676) target = $region108
        $region107: #{tpu_custom_call.1} parent=103 // pred_region
          %s679 = sand.u32 %s181, 1
          %s680 = sand.u32 %s181, 1
          %s681 = smul.addr %s680, 56
          %s682 = scalar_lea.vmem [#allocation3], %s681
        $region108: #{tpu_custom_call.1} parent=103 // pred_fallthru
          _
      $region104: #{tpu_custom_call.1} parent=5 // pred_fallthru
        _
    $region6: #{tpu_custom_call.1} parent=1 // loop_footer
      %s19 = sadd.s32 1, %s15
    $region7: #{tpu_custom_call.1} parent=1 // loop_footer_branch
      %14 = sbr.rel target = $region3
    $region8: #{tpu_custom_call.1} parent=1 // loop_exit
      _

</llo_original>
